<compile_context>
chip_gen: v7x
topology: tpu7x:2x2x1
jax: 0.10.0
libtpu: 0.0.40
codegen_flags: <defaults>
</compile_context>

<pallas_src>
import functools

import jax
import jax.numpy as jnp
from jax.experimental import pallas as pl
from jax.experimental.pallas import tpu as pltpu


_LANE = 1024            # lane-dense last dim (multiple of 128)
_MAX_BLOCK_ROWS = 512   # 512 x 1024 f32 = 2 MiB/block -> well within scoped VMEM


def _round_up(a: int, b: int) -> int:
    return (a + b - 1) // b * b


def _tpu_noise_kernel(seed_ref, x_ref, o_ref, *, stddev: float):
    # Per-tile seed -> i.i.d. noise across grid steps (and across parallel TCs).
    pltpu.prng_seed(seed_ref[0], pl.program_id(0))
    noise = pltpu.stateful_normal(x_ref.shape, jnp.float32)
    # Scale in f32, cast the noise once, add in the activation dtype.
    o_ref[...] = x_ref[...] + (noise * jnp.float32(stddev)).astype(o_ref.dtype)


def _addnoise_kernel(x_ref, n_ref, o_ref, *, stddev: float):
    # Portable fallback body: noise is a second streamed input.
    o_ref[...] = x_ref[...] + n_ref[...] * jnp.asarray(stddev, o_ref.dtype)


def _to_slab(x: jax.Array):
    """Flatten + zero-pad x to a (rows_pad, _LANE) lane-dense slab."""
    flat = x.reshape(-1)
    total = flat.shape[0]
    rows = pl.cdiv(total, _LANE)
    block_rows = min(_MAX_BLOCK_ROWS, _round_up(rows, 8))
    rows_pad = _round_up(rows, block_rows)
    padded = rows_pad * _LANE
    if padded != total:
        flat = jnp.pad(flat, (0, padded - total))
    return flat.reshape(rows_pad, _LANE), block_rows, total


def _from_slab(slab: jax.Array, total: int, shape) -> jax.Array:
    return slab.reshape(-1)[:total].reshape(shape)


def gaussian_noise(x: jax.Array, seed, stddev: float, training: bool = True) -> jax.Array:
    """Pallas equivalent of GaussianNoise.forward (eval mode = identity)."""
    if not training:
        return x

    x2, block_rows, total = _to_slab(x)
    rows_pad = x2.shape[0]
    grid = (rows_pad // block_rows,)
    blk = pl.BlockSpec((block_rows, _LANE), lambda i: (i, 0))
    out_shape = jax.ShapeDtypeStruct(x2.shape, x.dtype)

    if jax.default_backend() == "tpu":
        # Seed travels as a device scalar (no per-seed retraces).
        seed_arr = jnp.asarray(seed, dtype=jnp.int32).reshape((1,))
        kernel = functools.partial(_tpu_noise_kernel, stddev=float(stddev))
        itemsize = jnp.dtype(x.dtype).itemsize
        out2 = pl.pallas_call(
            kernel,
            out_shape=out_shape,
            grid=grid,
            in_specs=[
                pl.BlockSpec(memory_space=pltpu.MemorySpace.SMEM),  # seed scalar
                blk,                                                # x slab (tiled)
            ],
            out_specs=blk,
            input_output_aliases={1: 0},  # reuse the x slab's HBM buffer for y
            compiler_params=pltpu.CompilerParams(
                dimension_semantics=("parallel",)),
            cost_estimate=pl.CostEstimate(
                flops=2 * total,
                transcendentals=2 * total,          # in-kernel normal draw
                bytes_accessed=2 * total * itemsize),
        )(seed_arr, x2)
    else:
        # Non-TPU backends (interpret-mode checks): pltpu.prng_* does not lower
        # there, so stream precomputed N(0,1) noise through the same tiled kernel.
        key = jax.random.PRNGKey(seed)
        noise2 = jax.random.normal(key, x2.shape, dtype=x2.dtype)
        kernel = functools.partial(_addnoise_kernel, stddev=float(stddev))
        out2 = pl.pallas_call(
            kernel,
            out_shape=out_shape,
            grid=grid,
            in_specs=[blk, blk],
            out_specs=blk,
        )(x2, noise2)

    return _from_slab(out2, total, x.shape)


if __name__ == "__main__":
    key = jax.random.PRNGKey(0)
    # Small NCHW input consistent with a ResNet feature map.
    x = jax.random.normal(key, (2, 4, 16, 16), dtype=jnp.float32)
    stddev = 0.1

    y = gaussian_noise(x, seed=0, stddev=stddev, training=True)
    y = jax.block_until_ready(y)

    # Shape/dtype preserved; noise actually added with roughly the right scale.
    assert y.shape == x.shape and y.dtype == x.dtype
    diff = y - x
    assert bool(jnp.all(jnp.isfinite(diff)))
    d_std = float(jnp.std(diff))
    d_mean = float(jnp.mean(diff))
    assert 0.02 < d_std < 0.5, f"noise std off: {d_std}"
    assert abs(d_mean) < 0.05, f"noise mean off: {d_mean}"

    # Eval mode is identity.
    y_eval = gaussian_noise(x, seed=0, stddev=stddev, training=False)
    assert jnp.array_equal(y_eval, x)

    print("KERNEL_OK")
</pallas_src>

<mosaic_0001>
module attributes {stable_mosaic.version = 11 : i64} {
  func.func @_addnoise_kernel(%arg0: i32, %arg1: memref<8x1024xf32, #tpu.memory_space<vmem>>, %arg2: memref<8x1024xf32, #tpu.memory_space<vmem>>, %arg3: memref<8x1024xf32, #tpu.memory_space<vmem>>) attributes {dimension_semantics = [#tpu.dimension_semantics<arbitrary>], iteration_bounds = array<i64: 1>, scalar_prefetch = 0 : i64, scratch_operands = 0 : i64, tpu.core_type = #tpu.core_type<tc>, window_params = [{transform_indices = @transform_0, window_bounds = array<i64: 8, 1024>}, {transform_indices = @transform_1, window_bounds = array<i64: 8, 1024>}, {transform_indices = @transform_2, window_bounds = array<i64: 8, 1024>}]} {
    %c0 = arith.constant 0 : index
    %c0_0 = arith.constant 0 : index
    %0 = vector.load %arg1[%c0, %c0_0] : memref<8x1024xf32, #tpu.memory_space<vmem>>, vector<8x1024xf32>
    %c0_1 = arith.constant 0 : index
    %c0_2 = arith.constant 0 : index
    %1 = vector.load %arg2[%c0_1, %c0_2] : memref<8x1024xf32, #tpu.memory_space<vmem>>, vector<8x1024xf32>
    %cst = arith.constant 1.000000e-01 : f32
    %2 = vector.broadcast %cst : f32 to vector<8x1024xf32>
    %3 = arith.mulf %1, %2 : vector<8x1024xf32>
    %4 = arith.addf %0, %3 : vector<8x1024xf32>
    %c0_3 = arith.constant 0 : index
    %c0_4 = arith.constant 0 : index
    %5 = vector.load %arg3[%c0_3, %c0_4] : memref<8x1024xf32, #tpu.memory_space<vmem>>, vector<8x1024xf32>
    tpu.vector_store %arg3[%c0_3, %c0_4], %4 {strides = array<i32>} : memref<8x1024xf32, #tpu.memory_space<vmem>>, vector<8x1024xf32>,
    return
  }
  func.func @transform_0(%arg0: i32) -> (i32, i32) {
    %c0_i32 = arith.constant 0 : i32
    %c0_i32_0 = arith.constant 0 : i32
    return %arg0, %c0_i32 : i32, i32
  }
  func.func @transform_1(%arg0: i32) -> (i32, i32) {
    %c0_i32 = arith.constant 0 : i32
    %c0_i32_0 = arith.constant 0 : i32
    return %arg0, %c0_i32 : i32, i32
  }
  func.func @transform_2(%arg0: i32) -> (i32, i32) {
    %c0_i32 = arith.constant 0 : i32
    %c0_i32_0 = arith.constant 0 : i32
    return %arg0, %c0_i32 : i32, i32
  }
}

</mosaic_0001>

<llo_original>
// kernel: tpu_custom_call.1
$region0: #{tpu_custom_call.1}
  #allocation0 [shape = 'u32[]', space=smem, size = 0x4, offset = 0x4, fixed_abs, tag = 'smem constant byte address 0x4 - core index']
  #allocation1 [shape = 'u32[144,128]{1,0:T(1,128)}', space=vmem, size = 0x12000, scoped, tag = 'internal scratch']
  %s0 = inlined_call_operand.hbm [shape: f32[8,1024], index: 0, kind: input, shape index: {}]
  %s1 = inlined_call_operand.hbm [shape: f32[8,1024], index: 1, kind: input, shape index: {}]
  %s2 = inlined_call_operand.hbm [shape: f32[8,1024], index: 2, kind: output, shape index: {}]
  %s3 = sld [smem:[#allocation0]]
  $region26: #{tpu_custom_call.1} parent=0
    _
  %s5 = ssub.s32 1, %s3
  %s6 = scalar_select 0, %s5, %s3
  $region1: #{tpu_custom_call.1} parent=0
    #allocation2 [shape = 'u8[32768]{0}', space=vmem, size = 0x8000, scoped, tag = 'input window, operand 0, single buffered']
    #allocation3 [shape = 's32[1]{0}', space=sflag, size = 0x4, scoped, tag = 'scoped memory for tpu_custom_call.1']
    #allocation4 [shape = 's32[1]{0}', space=sflag, size = 0x4, scoped, tag = 'scoped memory for tpu_custom_call.1']
    #allocation5 [shape = 'u8[32768]{0}', space=vmem, size = 0x8000, scoped, tag = 'input window, operand 1, single buffered']
    #allocation6 [shape = 's32[1]{0}', space=sflag, size = 0x4, scoped, tag = 'scoped memory for tpu_custom_call.1']
    #allocation7 [shape = 'u8[32768]{0}', space=vmem, size = 0x8000, scoped, tag = 'output window, operand 0, single buffered']
    %7 = vsyncpa [#allocation3], 0
    %8 = vsyncpa [#allocation6], 0
    %9 = vsyncpa [#allocation4], 0
    // Predicated region
    $region2: #{tpu_custom_call.1} parent=1 // pred_check
      _
    $region3: #{tpu_custom_call.1} parent=1 // pred_check_branch
      %11 = sbr.rel (0) target = $region5
    $region4: #{tpu_custom_call.1} parent=1 // pred_region
      %s13 = ssub.s32 1024, 1024
      %14 = vsyncadd [#allocation3], %s13
      %s16 = sshll.u32 [#allocation2], 4
      %s17 = int_to_ptr.vmem [resolvable:$true] %s16
      %19 = dma.hbm_to_vmem [thread:$0]  %s0, 1024, %s17, [#allocation3]
    $region5: #{tpu_custom_call.1} parent=1 // pred_fallthru
      _
    // Predicated region
    $region6: #{tpu_custom_call.1} parent=1 // pred_check
      _
    $region7: #{tpu_custom_call.1} parent=1 // pred_check_branch
      %21 = sbr.rel (0) target = $region9
    $region8: #{tpu_custom_call.1} parent=1 // pred_region
      %s23 = ssub.s32 1024, 1024
      %24 = vsyncadd [#allocation6], %s23
      %s26 = sshll.u32 [#allocation5], 4
      %s27 = int_to_ptr.vmem [resolvable:$true] %s26
      %29 = dma.hbm_to_vmem [thread:$0]  %s1, 1024, %s27, [#allocation6]
    $region9: #{tpu_custom_call.1} parent=1 // pred_fallthru
      _
    // Predicated region
    $region10: #{tpu_custom_call.1} parent=1 // pred_check
      _
    $region11: #{tpu_custom_call.1} parent=1 // pred_check_branch
      %31 = sbr.rel (0) target = $region13
    $region12: #{tpu_custom_call.1} parent=1 // pred_region
      %32 = dma.done [#allocation3], 1024
    $region13: #{tpu_custom_call.1} parent=1 // pred_fallthru
      _
    // Predicated region
    $region14: #{tpu_custom_call.1} parent=1 // pred_check
      _
    $region15: #{tpu_custom_call.1} parent=1 // pred_check_branch
      %34 = sbr.rel (0) target = $region17
    $region16: #{tpu_custom_call.1} parent=1 // pred_region
      %35 = dma.done [#allocation6], 1024
    $region17: #{tpu_custom_call.1} parent=1 // pred_fallthru
      _
    %v36 = vld [vmem:[#allocation2] sm:$0xff]
    %v37 = vld [vmem:[#allocation2 + $0x8] sm:$0xff]
    %v38 = vld [vmem:[#allocation2 + $0x10] sm:$0xff]
    %v39 = vld [vmem:[#allocation2 + $0x18] sm:$0xff]
    %v40 = vld [vmem:[#allocation2 + $0x20] sm:$0xff]
    %v41 = vld [vmem:[#allocation2 + $0x28] sm:$0xff]
    %v42 = vld [vmem:[#allocation2 + $0x30] sm:$0xff]
    %v43 = vld [vmem:[#allocation2 + $0x38] sm:$0xff]
    %v44 = vld [vmem:[#allocation5] sm:$0xff]
    %v45 = vld [vmem:[#allocation5 + $0x8] sm:$0xff]
    %v46 = vld [vmem:[#allocation5 + $0x10] sm:$0xff]
    %v47 = vld [vmem:[#allocation5 + $0x18] sm:$0xff]
    %v48 = vld [vmem:[#allocation5 + $0x20] sm:$0xff]
    %v49 = vld [vmem:[#allocation5 + $0x28] sm:$0xff]
    %v50 = vld [vmem:[#allocation5 + $0x30] sm:$0xff]
    %v51 = vld [vmem:[#allocation5 + $0x38] sm:$0xff]
    %v52 = vmul.f32 %v44, 0.1
    %v53 = vmul.f32 %v45, 0.1
    %v54 = vmul.f32 %v46, 0.1
    %v55 = vmul.f32 %v47, 0.1
    %v56 = vmul.f32 %v48, 0.1
    %v57 = vmul.f32 %v49, 0.1
    %v58 = vmul.f32 %v50, 0.1
    %v59 = vmul.f32 %v51, 0.1
    %v60 = vadd.f32 %v36, %v52
    %v61 = vadd.f32 %v37, %v53
    %v62 = vadd.f32 %v38, %v54
    %v63 = vadd.f32 %v39, %v55
    %v64 = vadd.f32 %v40, %v56
    %v65 = vadd.f32 %v41, %v57
    %v66 = vadd.f32 %v42, %v58
    %v67 = vadd.f32 %v43, %v59
    %68 = vst [vmem:[#allocation7] sm:$0xff] %v60
    %69 = vst [vmem:[#allocation7 + $0x8] sm:$0xff] %v61
    %70 = vst [vmem:[#allocation7 + $0x10] sm:$0xff] %v62
    %71 = vst [vmem:[#allocation7 + $0x18] sm:$0xff] %v63
    %72 = vst [vmem:[#allocation7 + $0x20] sm:$0xff] %v64
    %73 = vst [vmem:[#allocation7 + $0x28] sm:$0xff] %v65
    %74 = vst [vmem:[#allocation7 + $0x30] sm:$0xff] %v66
    %75 = vst [vmem:[#allocation7 + $0x38] sm:$0xff] %v67
    // Predicated region
    $region18: #{tpu_custom_call.1} parent=1 // pred_check
      _
    $region19: #{tpu_custom_call.1} parent=1 // pred_check_branch
      %77 = sbr.rel (0) target = $region21
    $region20: #{tpu_custom_call.1} parent=1 // pred_region
      %s79 = ssub.s32 1024, 1024
      %80 = vsyncadd [#allocation4], %s79
      %s82 = sshll.u32 [#allocation7], 4
      %s83 = int_to_ptr.vmem [resolvable:$true] %s82
      %85 = dma.vmem_to_hbm [thread:$0]  %s83, 1024, %s2, [#allocation4]
    $region21: #{tpu_custom_call.1} parent=1 // pred_fallthru
      _
    // Predicated region
    $region22: #{tpu_custom_call.1} parent=1 // pred_check
      _
    $region23: #{tpu_custom_call.1} parent=1 // pred_check_branch
      %87 = sbr.rel (0) target = $region25
    $region24: #{tpu_custom_call.1} parent=1 // pred_region
      %88 = dma.done [#allocation4], 1024
    $region25: #{tpu_custom_call.1} parent=1 // pred_fallthru
      _
    %89 = vsyncpa [#allocation3], 1
    %90 = vsyncpa [#allocation6], 1
    %91 = vsyncpa [#allocation4], 1

</llo_original>
